<compile_context>
chip_gen: v7x
topology: tpu7x:2x2x1
jax: 0.10.0
libtpu: 0.0.40
codegen_flags: <defaults>
</compile_context>

<pallas_src>
import jax
import jax.numpy as jnp
from jax.experimental import pallas as pl
from jax.experimental.pallas import tpu as pltpu


H_CHUNK = 32  # sublane chunk for the hidden dim (multiple of 8)


def _round_up(n, m):
    return ((n + m - 1) // m) * m


def make_mlp_kernel(h_pad, h_chunk):
    """Kernel factory; h_pad / h_chunk are static Python ints."""
    n_chunks = h_pad // h_chunk

    def mlp_kernel(x_ref, p_ref, b2_ref, o_ref):
        # x_ref : (1, TB)     batch along the 128-lane axis
        # p_ref : (H_pad, 3)  columns: [fc1.weight | fc1.bias | fc2.weight]
        # b2_ref: (1,)        fc2 bias, SMEM scalar
        x = x_ref[...]                                      # (1, TB)
        acc = jnp.zeros(x.shape, jnp.float32)               # (1, TB) running sum over H
        # Static, small chunk loop over the hidden dim: each chunk's (hc, TB)
        # activation is consumed immediately, bounding live vregs.
        for c in range(n_chunks):
            lo, hi = c * h_chunk, (c + 1) * h_chunk
            w1 = p_ref[lo:hi, 0:1]                          # (hc, 1)
            b1 = p_ref[lo:hi, 1:2]                          # (hc, 1)
            w2 = p_ref[lo:hi, 2:3]                          # (hc, 1)
            h = jnp.maximum(w1 * x + b1, 0.0)               # (hc, TB) VPU broadcast FMA + ReLU
            acc = acc + jnp.sum(h * w2, axis=0, keepdims=True)  # XLU sublane reduce
        o_ref[...] = (acc + b2_ref[0]).astype(o_ref.dtype)

    return mlp_kernel


def pack_params(w1, b1, w2, *, h_chunk=H_CHUNK):
    """Build the (H_pad, 3) packed parameter tile ONCE (init time, not per call).

    Rows >= H are zero (w2 = 0 there), so padded hidden units contribute 0.
    """
    H = w2.shape[0]
    h_pad = _round_up(max(H, h_chunk), h_chunk)
    packed = jnp.zeros((h_pad, 3), jnp.float32)
    packed = packed.at[:H, 0].set(w1.reshape(H).astype(jnp.float32))
    packed = packed.at[:H, 1].set(b1.reshape(H).astype(jnp.float32))
    packed = packed.at[:H, 2].set(w2.reshape(H).astype(jnp.float32))
    return packed


def neural_net_forward(x, packed, b2, *, batch_tile=512, h_chunk=H_CHUNK):
    """x: (B, 1) float32 -> (B, 1) float32; same math as the PyTorch forward."""
    B = x.shape[0]
    h_pad = packed.shape[0]

    # Lane-dense batch tile: multiple of 128, at most batch_tile, and no
    # larger than the batch rounded up to a lane (keeps small-B fast).
    tb = min(_round_up(batch_tile, 128), _round_up(B, 128))
    n_tiles = pl.cdiv(B, tb)

    # (B,1) <-> (1,B) reshapes are layout-free: no pad / slice HBM round trips.
    x_lanes = x.reshape(1, B).astype(jnp.float32)
    b2_s = b2.reshape((1,)).astype(jnp.float32)

    y_lanes = pl.pallas_call(
        make_mlp_kernel(h_pad, h_chunk),
        out_shape=jax.ShapeDtypeStruct((1, B), jnp.float32),
        grid=(n_tiles,),
        in_specs=[
            pl.BlockSpec((1, tb), lambda i: (0, i)),            # x, lane-dense (ragged last block OK)
            pl.BlockSpec((h_pad, 3), lambda i: (0, 0)),         # packed params, resident
            pl.BlockSpec(memory_space=pltpu.MemorySpace.SMEM),  # fc2 bias scalar
        ],
        out_specs=pl.BlockSpec((1, tb), lambda i: (0, i)),      # lane-dense output
        compiler_params=pltpu.CompilerParams(
            dimension_semantics=("parallel",)),
    )(x_lanes, packed, b2_s)

    return y_lanes.reshape(B, 1)


def _reference(x, w1, b1, w2, b2):
    return jnp.maximum(x @ w1 + b1, 0.0) @ w2 + b2


if __name__ == "__main__":
    key = jax.random.PRNGKey(0)

    # --- primary small case (matches the PyTorch module defaults) ---
    B = 8           # batch of scalar samples
    H = 32          # hidden_neurons (slider value); deterministic choice
    k_x, k_w1, k_b1, k_w2, k_b2, k2 = jax.random.split(key, 6)

    x = jax.random.normal(k_x, (B, 1), dtype=jnp.float32)   # nn.Linear(1, H) input
    bound1 = 1.0 / jnp.sqrt(1.0)
    w1 = jax.random.uniform(k_w1, (1, H), jnp.float32, -bound1, bound1)
    b1 = jax.random.uniform(k_b1, (1, H), jnp.float32, -bound1, bound1)
    bound2 = 1.0 / jnp.sqrt(float(H))
    w2 = jax.random.uniform(k_w2, (H, 1), jnp.float32, -bound2, bound2)
    b2 = jax.random.uniform(k_b2, (1, 1), jnp.float32, -bound2, bound2)

    packed = pack_params(w1, b1, w2)          # built once, reused every forward
    y = neural_net_forward(x, packed, b2)
    jax.block_until_ready(y)

    y_ref = _reference(x, w1, b1, w2, b2)
    assert y.shape == (B, 1)
    assert jnp.allclose(y, y_ref, atol=1e-5, rtol=1e-5)

    # --- second case: multi-tile grid, ragged last block, padded hidden dim ---
    B2, H2 = 1000, 5
    k_x2, k_w12, k_b12, k_w22, k_b22 = jax.random.split(k2, 5)
    x2 = jax.random.normal(k_x2, (B2, 1), dtype=jnp.float32)
    w12 = jax.random.uniform(k_w12, (1, H2), jnp.float32, -1.0, 1.0)
    b12 = jax.random.uniform(k_b12, (1, H2), jnp.float32, -1.0, 1.0)
    bnd = 1.0 / jnp.sqrt(float(H2))
    w22 = jax.random.uniform(k_w22, (H2, 1), jnp.float32, -bnd, bnd)
    b22 = jax.random.uniform(k_b22, (1, 1), jnp.float32, -bnd, bnd)

    packed2 = pack_params(w12, b12, w22)
    y2 = neural_net_forward(x2, packed2, b22)
    jax.block_until_ready(y2)
    y2_ref = _reference(x2, w12, b12, w22, b22)
    assert y2.shape == (B2, 1)
    assert jnp.allclose(y2, y2_ref, atol=1e-5, rtol=1e-5)

    print("KERNEL_OK")
</pallas_src>

<mosaic_0001>
module attributes {stable_mosaic.version = 11 : i64} {
  func.func @mlp_kernel(%arg0: i32, %arg1: memref<1x128xf32, #tpu.memory_space<vmem>>, %arg2: memref<32x3xf32, #tpu.memory_space<vmem>>, %arg3: memref<1xf32, #tpu.memory_space<smem>>, %arg4: memref<1x128xf32, #tpu.memory_space<vmem>>) attributes {dimension_semantics = [#tpu.dimension_semantics<parallel>], iteration_bounds = array<i64: 1>, scalar_prefetch = 0 : i64, scratch_operands = 0 : i64, tpu.core_type = #tpu.core_type<tc>, window_params = [{transform_indices = @transform_0, window_bounds = array<i64: 1, 128>}, {pipeline_mode = #tpu.pipeline_mode<synchronous>, transform_indices = @transform_1, window_bounds = array<i64: 32, 3>}, {transform_indices = @transform_2, window_bounds = array<i64: 1>}, {transform_indices = @transform_3, window_bounds = array<i64: 1, 128>}]} {
    %c0 = arith.constant 0 : index
    %c0_0 = arith.constant 0 : index
    %0 = vector.load %arg1[%c0, %c0_0] : memref<1x128xf32, #tpu.memory_space<vmem>>, vector<1x128xf32>
    %cst = arith.constant 0.000000e+00 : f32
    %1 = vector.broadcast %cst : f32 to vector<1x128xf32>
    %c0_1 = arith.constant 0 : index
    %c0_2 = arith.constant 0 : index
    %2 = vector.load %arg2[%c0_1, %c0_2] : memref<32x3xf32, #tpu.memory_space<vmem>>, vector<32x1xf32>
    %c0_3 = arith.constant 0 : index
    %c1 = arith.constant 1 : index
    %3 = vector.load %arg2[%c0_3, %c1] : memref<32x3xf32, #tpu.memory_space<vmem>>, vector<32x1xf32>
    %c0_4 = arith.constant 0 : index
    %c2 = arith.constant 2 : index
    %4 = vector.load %arg2[%c0_4, %c2] : memref<32x3xf32, #tpu.memory_space<vmem>>, vector<32x1xf32>
    %5 = vector.broadcast %2 : vector<32x1xf32> to vector<32x128xf32>
    %6 = vector.broadcast %0 : vector<1x128xf32> to vector<32x128xf32>
    %7 = arith.mulf %5, %6 : vector<32x128xf32>
    %8 = vector.broadcast %3 : vector<32x1xf32> to vector<32x128xf32>
    %9 = arith.addf %7, %8 : vector<32x128xf32>
    %cst_5 = arith.constant 0.000000e+00 : f32
    %10 = vector.broadcast %cst_5 : f32 to vector<32x128xf32>
    %11 = arith.maximumf %9, %10 : vector<32x128xf32>
    %12 = vector.broadcast %4 : vector<32x1xf32> to vector<32x128xf32>
    %13 = arith.mulf %11, %12 : vector<32x128xf32>
    %cst_6 = arith.constant dense<0.000000e+00> : vector<128xf32>
    %14 = vector.multi_reduction <add>, %13, %cst_6 [0] : vector<32x128xf32> to vector<128xf32>
    %15 = vector.shape_cast %14 : vector<128xf32> to vector<1x128xf32>
    %16 = arith.addf %1, %15 : vector<1x128xf32>
    %c0_7 = arith.constant 0 : index
    %17 = memref.load %arg3[%c0_7] : memref<1xf32, #tpu.memory_space<smem>>
    %18 = vector.broadcast %17 : f32 to vector<1x128xf32>
    %19 = arith.addf %16, %18 : vector<1x128xf32>
    %c0_8 = arith.constant 0 : index
    %c0_9 = arith.constant 0 : index
    %20 = vector.load %arg4[%c0_8, %c0_9] : memref<1x128xf32, #tpu.memory_space<vmem>>, vector<1x128xf32>
    tpu.vector_store %arg4[%c0_8, %c0_9], %19 {strides = array<i32>} : memref<1x128xf32, #tpu.memory_space<vmem>>, vector<1x128xf32>,
    return
  }
  func.func @transform_0(%arg0: i32) -> (i32, i32) {
    %c0_i32 = arith.constant 0 : i32
    %c0_i32_0 = arith.constant 0 : i32
    return %c0_i32, %arg0 : i32, i32
  }
  func.func @transform_1(%arg0: i32) -> (i32, i32) {
    %c0_i32 = arith.constant 0 : i32
    %c0_i32_0 = arith.constant 0 : i32
    %c0_i32_1 = arith.constant 0 : i32
    return %c0_i32, %c0_i32_0 : i32, i32
  }
  func.func @transform_2(%arg0: i32) -> i32 {
    %c0_i32 = arith.constant 0 : i32
    %c0_i32_0 = arith.constant 0 : i32
    return %c0_i32 : i32
  }
  func.func @transform_3(%arg0: i32) -> (i32, i32) {
    %c0_i32 = arith.constant 0 : i32
    %c0_i32_0 = arith.constant 0 : i32
    return %c0_i32, %arg0 : i32, i32
  }
}

</mosaic_0001>

<llo_original>
// kernel: tpu_custom_call.1
$region0: #{tpu_custom_call.1}
  #allocation0 [shape = 'u32[]', space=smem, size = 0x4, offset = 0x4, fixed_abs, tag = 'smem constant byte address 0x4 - core index']
  #allocation1 [shape = 'u32[144,128]{1,0:T(1,128)}', space=vmem, size = 0x12000, scoped, tag = 'internal scratch']
  #allocation2 [shape = 'f32[1]{0:T(128)S(6)}', space=smem, size = 0x200, scoped, tag = 'scoped memory for tpu_custom_call.1']
  %s0 = inlined_call_operand.vmem [shape: f32[1,8], index: 0, kind: input, shape index: {}]
  %s1 = inlined_call_operand.vmem [shape: f32[32,3], index: 1, kind: input, shape index: {}]
  %s2 = inlined_call_operand.<no memory space> [shape: f32[1], index: 2, kind: input, shape index: {}]
  %s3 = inlined_call_operand.hbm [shape: f32[1,8], index: 3, kind: output, shape index: {}]
  %s4 = sld [smem:[#allocation0]]
  $region22: #{tpu_custom_call.1} parent=0
    _
  %s6 = ssub.s32 1, %s4
  %s7 = scalar_select 0, %s6, %s4
  %8 = sst [smem:[#allocation2]] %s2
  $region1: #{tpu_custom_call.1} parent=0
    #allocation3 [shape = 'u8[512]{0}', space=vmem, size = 0x400, scoped, tag = 'output window, operand 0, single buffered']
    #allocation4 [shape = 's32[1]{0}', space=sflag, size = 0x4, scoped, tag = 'scoped memory for tpu_custom_call.1']
    %9 = vsyncpa [#allocation4], 0
    // Predicated region
    $region2: #{tpu_custom_call.1} parent=1 // pred_check
      _
    $region3: #{tpu_custom_call.1} parent=1 // pred_check_branch
      %11 = sbr.rel (0) target = $region5
    $region4: #{tpu_custom_call.1} parent=1 // pred_region
      _
    $region5: #{tpu_custom_call.1} parent=1 // pred_fallthru
      _
    // Predicated region
    $region6: #{tpu_custom_call.1} parent=1 // pred_check
      _
    $region7: #{tpu_custom_call.1} parent=1 // pred_check_branch
      %13 = sbr.rel (0) target = $region9
    $region8: #{tpu_custom_call.1} parent=1 // pred_region
      _
    $region9: #{tpu_custom_call.1} parent=1 // pred_fallthru
      _
    // Predicated region
    $region10: #{tpu_custom_call.1} parent=1 // pred_check
      _
    $region11: #{tpu_custom_call.1} parent=1 // pred_check_branch
      %15 = sbr.rel (0) target = $region13
    $region12: #{tpu_custom_call.1} parent=1 // pred_region
      _
    $region13: #{tpu_custom_call.1} parent=1 // pred_fallthru
      _
    %v16 = vld [vmem:[%s0] sm:$0x1]
    %v17 = vld [vmem:[%s1] sm:$0xff]
    %v18 = vld [vmem:[%s1 + $0x8] sm:$0xff]
    %v19 = vld [vmem:[%s1 + $0x10] sm:$0xff]
    %v20 = vld [vmem:[%s1 + $0x18] sm:$0xff]
    %22 = vset.pattern.permute.xlu0 0
    %23 = vperm.xlu0 %22, %v17
    %v24 = vpop.permute.xlu0 %23
    %27 = vset.pattern.permute.xlu0 0
    %28 = vperm.xlu0 %27, %v18
    %v29 = vpop.permute.xlu0 %28
    %32 = vset.pattern.permute.xlu0 0
    %33 = vperm.xlu0 %32, %v19
    %v34 = vpop.permute.xlu0 %33
    %37 = vset.pattern.permute.xlu0 0
    %38 = vperm.xlu0 %37, %v20
    %v39 = vpop.permute.xlu0 %38
    %v42 = vlaneseq
    %v43 = vshrl.u32 %v42, 7
    %v44 = vsub.s32 0, %v43
    %v45 = vrot.slane %v16, %v44
    %v47 = vmul.f32 %v24, %v45
    %v48 = vmul.f32 %v29, %v45
    %v49 = vmul.f32 %v34, %v45
    %v50 = vmul.f32 %v39, %v45
    %51 = vset.pattern.permute.xlu0 1
    %52 = vperm.xlu0 %51, %v17
    %v53 = vpop.permute.xlu0 %52
    %55 = vset.pattern.permute.xlu0 1
    %56 = vperm.xlu0 %55, %v18
    %v57 = vpop.permute.xlu0 %56
    %59 = vset.pattern.permute.xlu0 1
    %60 = vperm.xlu0 %59, %v19
    %v61 = vpop.permute.xlu0 %60
    %63 = vset.pattern.permute.xlu0 1
    %64 = vperm.xlu0 %63, %v20
    %v65 = vpop.permute.xlu0 %64
    %v67 = vadd.f32 %v47, %v53
    %v68 = vadd.f32 %v48, %v57
    %v69 = vadd.f32 %v49, %v61
    %v70 = vadd.f32 %v50, %v65
    %v71 = vmax.f32 %v67, 0.0
    %v72 = vmax.f32 %v68, 0.0
    %v73 = vmax.f32 %v69, 0.0
    %v74 = vmax.f32 %v70, 0.0
    %75 = vset.pattern.permute.xlu0 2
    %76 = vperm.xlu0 %75, %v17
    %v77 = vpop.permute.xlu0 %76
    %79 = vset.pattern.permute.xlu0 2
    %80 = vperm.xlu0 %79, %v18
    %v81 = vpop.permute.xlu0 %80
    %83 = vset.pattern.permute.xlu0 2
    %84 = vperm.xlu0 %83, %v19
    %v85 = vpop.permute.xlu0 %84
    %87 = vset.pattern.permute.xlu0 2
    %88 = vperm.xlu0 %87, %v20
    %v89 = vpop.permute.xlu0 %88
    %v91 = vmul.f32 %v71, %v77
    %v92 = vmul.f32 %v72, %v81
    %v93 = vmul.f32 %v73, %v85
    %v94 = vmul.f32 %v74, %v89
    %v95 = vadd.f32 %v91, %v92
    %v96 = vadd.f32 %v95, %v93
    %v97 = vadd.f32 %v96, %v94
    %v98 = vrot.slane %v97, 4
    %v99 = vadd.f32 %v97, %v98
    %v100 = vrot.slane %v99, 2
    %v101 = vadd.f32 %v99, %v100
    %v102 = vrot.slane %v101, 1
    %v103 = vadd.f32 %v101, %v102
    %v104 = vadd.f32 %v103, 0.0
    %s105 = sld [smem:[#allocation2]]
    %v106 = vstv %s105
    %v107 = vadd.f32 %v104, %v106
    %108 = vst [vmem:[#allocation3] sm:$0x1] %v107
    // Predicated region
    $region14: #{tpu_custom_call.1} parent=1 // pred_check
      _
    $region15: #{tpu_custom_call.1} parent=1 // pred_check_branch
      %110 = sbr.rel (0) target = $region17
    $region16: #{tpu_custom_call.1} parent=1 // pred_region
      %s112 = ssub.s32 16, 16
      %113 = vsyncadd [#allocation4], %s112
      %s115 = sshll.u32 [#allocation3], 4
      %s116 = int_to_ptr.vmem [resolvable:$true] %s115
      %118 = dma.vmem_to_hbm [thread:$0]  %s116, 16, %s3, [#allocation4]
    $region17: #{tpu_custom_call.1} parent=1 // pred_fallthru
      _
    // Predicated region
    $region18: #{tpu_custom_call.1} parent=1 // pred_check
      _
    $region19: #{tpu_custom_call.1} parent=1 // pred_check_branch
      %120 = sbr.rel (0) target = $region21
    $region20: #{tpu_custom_call.1} parent=1 // pred_region
      %121 = dma.done [#allocation4], 16
    $region21: #{tpu_custom_call.1} parent=1 // pred_fallthru
      _
    %122 = vsyncpa [#allocation4], 1

</llo_original>
